<compile_context>
chip_gen: v7x
topology: tpu7x:2x2x1
jax: 0.10.0
libtpu: 0.0.40
codegen_flags: <defaults>
</compile_context>

<pallas_src>
import math
from functools import lru_cache

import numpy as np
import jax
import jax.numpy as jnp
from jax.experimental import pallas as pl
from jax.experimental.pallas import tpu as pltpu

_VMEM_LIMIT = 32 * 1024 * 1024      # < physical VMEM on v5e/v6e (128 MiB) and v7x (64 MiB)
_P1 = pltpu.CompilerParams(dimension_semantics=("parallel",),
                           vmem_limit_bytes=_VMEM_LIMIT)
_P2 = pltpu.CompilerParams(dimension_semantics=("parallel", "parallel"),
                           vmem_limit_bytes=_VMEM_LIMIT)


# --------------------------------------------------------------------------
# helpers
# --------------------------------------------------------------------------
def _round_up(x, m):
    return ((x + m - 1) // m) * m


def _largest_divisor_leq(n, cap, multiple=1):
    cap = max(multiple, min(n, cap))
    cap -= cap % multiple
    d = cap
    while d >= multiple:
        if n % d == 0:
            return d
        d -= multiple
    return multiple


def _choose_bm(Mp, K, itemsize):
    """Row block for (Mp,K)@(K,N): ~2MiB of A per block (these matmuls are
    HBM-bound), but keep >=4 grid steps when M allows (2 per v7x TensorCore,
    and pipelining headroom)."""
    cap = min(2048, max(8, (2 * 1024 * 1024) // max(1, K * itemsize)))
    if Mp >= 64:
        cap = min(cap, Mp // 4)
    elif Mp >= 16:
        cap = min(cap, Mp // 2)
    cap = max(8, cap - cap % 8)
    return _largest_divisor_leq(Mp, cap, multiple=8)


def _gelu_f32(x):
    """Exact-erf GELU (F.gelu(approximate='none')) built from elementary ops so it
    lowers in Mosaic: erf via Abramowitz-Stegun 7.1.26, |erf error| < 1.5e-7
    (far below bf16 resolution)."""
    z = x * 0.7071067811865476
    az = jnp.abs(z)
    t = 1.0 / (1.0 + 0.3275911 * az)
    poly = t * (0.254829592 + t * (-0.284496736 + t * (1.421413741
               + t * (-1.453152027 + t * 1.061405429))))
    erf_abs = 1.0 - poly * jnp.exp(-az * az)
    erf_z = jnp.where(z < 0, -erf_abs, erf_abs)
    return 0.5 * x * (1.0 + erf_z)


# --------------------------------------------------------------------------
# Pallas kernels
# --------------------------------------------------------------------------
@lru_cache(maxsize=None)
def _mm_kernel_factory(has_ln, has_bias, n_adds, apply_gelu):
    def kernel(*refs):
        it = iter(refs)
        x_ref = next(it)
        w_ref = next(it)
        g_ref = next(it) if has_ln else None
        be_ref = next(it) if has_ln else None
        bias_ref = next(it) if has_bias else None
        add_refs = [next(it) for _ in range(n_adds)]
        o_ref = next(it)

        x = x_ref[...]
        if has_ln:                                  # fused PreNorm (f32 math)
            x = x.astype(jnp.float32)
            mu = jnp.mean(x, axis=-1, keepdims=True)
            var = jnp.mean(jnp.square(x - mu), axis=-1, keepdims=True)
            x = (x - mu) * jax.lax.rsqrt(var + 1e-5) * g_ref[...] + be_ref[...]
        acc = jnp.dot(x.astype(jnp.bfloat16), w_ref[...],
                      preferred_element_type=jnp.float32)
        if has_bias:
            acc = acc + bias_ref[...]
        if apply_gelu:
            acc = _gelu_f32(acc)
        for ar in add_refs:                         # residual / parallel branches
            acc = acc + ar[...].astype(jnp.float32)
        o_ref[...] = acc.astype(o_ref.dtype)
    return kernel


def pallas_matmul(a, w, *, ln=None, bias=None, adds=(), gelu=False,
                  out_dtype=jnp.bfloat16):
    """(M,K) @ (K,N) on the MXU, bf16 operands / f32 accumulation.
    Optional fused row-LayerNorm of `a` (ln=(gamma,beta)), bias, exact GELU and
    any number of elementwise `adds` (residual / parallel branch) epilogues.
    Output dtype defaults to bf16 (downstream kernels re-cast anyway)."""
    M, K = a.shape
    K2, N = w.shape
    assert K == K2
    w = w.astype(jnp.bfloat16)
    adds = list(adds)

    Np = N
    if N < 8:                                       # tiny channel heads (e.g. RGB)
        Np = 8
        w = jnp.pad(w, ((0, 0), (0, Np - N)))
        if bias is not None:
            bias = jnp.pad(bias, (0, Np - N))
        adds = [jnp.pad(ad, ((0, 0), (0, Np - N))) for ad in adds]

    Mp = _round_up(M, 8)
    if Mp != M:
        a = jnp.pad(a, ((0, Mp - M), (0, 0)))
        adds = [jnp.pad(ad, ((0, Mp - M), (0, 0))) for ad in adds]

    bm = _choose_bm(Mp, K, a.dtype.itemsize)

    in_specs = [pl.BlockSpec((bm, K), lambda i: (i, 0)),
                pl.BlockSpec((K, Np), lambda i: (0, 0))]
    args = [a, w]
    if ln is not None:
        gamma, beta = ln
        in_specs += [pl.BlockSpec((1, K), lambda i: (0, 0)),
                     pl.BlockSpec((1, K), lambda i: (0, 0))]
        args += [gamma.reshape(1, K).astype(jnp.float32),
                 beta.reshape(1, K).astype(jnp.float32)]
    if bias is not None:
        in_specs.append(pl.BlockSpec((1, Np), lambda i: (0, 0)))
        args.append(bias.reshape(1, Np).astype(jnp.float32))
    for ad in adds:                                 # native dtype; upcast in-kernel
        in_specs.append(pl.BlockSpec((bm, Np), lambda i: (i, 0)))
        args.append(ad)

    out = pl.pallas_call(
        _mm_kernel_factory(ln is not None, bias is not None, len(adds), gelu),
        out_shape=jax.ShapeDtypeStruct((Mp, Np), out_dtype),
        grid=(Mp // bm,),
        in_specs=in_specs,
        out_specs=pl.BlockSpec((bm, Np), lambda i: (i, 0)),
        compiler_params=_P1,
    )(*args)

    if Mp != M:
        out = out[:M]
    if Np != N:
        out = out[:, :N]
    return out


@lru_cache(maxsize=None)
def _make_dw_kernel(D, H, W, apply_gelu):
    """Depthwise 3x3x3, stride 1, pad 1: all 27 taps done in-kernel on a haloed
    (Dp,Hp,Wp,C) block.  D loop is statically unrolled; 27-tap chain split into
    4 independent partial sums (fills VALU slots); optional fused exact GELU."""
    def kernel(x_ref, w_ref, o_ref):
        w = w_ref[...]                                   # (27,1,1,tc) f32, hoisted
        for dd in range(D):                              # static unroll
            parts = [None, None, None, None]
            for k in range(27):
                kd, r = divmod(k, 9)
                kh, kw = divmod(r, 3)
                term = x_ref[0, dd + kd, kh:kh + H, kw:kw + W, :] * w[k]
                j = k & 3
                parts[j] = term if parts[j] is None else parts[j] + term
            acc = (parts[0] + parts[1]) + (parts[2] + parts[3])
            if apply_gelu:
                acc = _gelu_f32(acc)
            o_ref[0, dd] = acc.astype(o_ref.dtype)
    return kernel


def pallas_depthwise3(x_cl, w27, gelu=False):
    """Depthwise 3x3x3 conv, stride 1, pad 1, groups=C.  w27: (27, 1, 1, C) f32."""
    B, D, H, W, C = x_cl.shape
    # TODO(synk): halo via XLA pad; in-kernel halo DMA would avoid this full copy.
    xp = jnp.pad(x_cl, ((0, 0), (1, 1), (1, 1), (1, 1), (0, 0)))
    Dp, Hp, Wp = D + 2, H + 2, W + 2
    itemsize = xp.dtype.itemsize
    vmem_cap = max(1, (3 * 1024 * 1024) // (Dp * Hp * Wp * itemsize))
    # Channel chunks must be a multiple of 128 (lane-tiling rule) or the full C.
    if C % 128 == 0 and C >= 256:
        n128 = C // 128
        per_cap = max(1, min(vmem_cap // 128, n128 // 2))   # >=2 chunks for v7x megacore
        tc = 128 * _largest_divisor_leq(n128, per_cap)
    else:
        tc = C
    grid = (B, C // tc)
    return pl.pallas_call(
        _make_dw_kernel(D, H, W, gelu),
        out_shape=jax.ShapeDtypeStruct((B, D, H, W, C), jnp.bfloat16),
        grid=grid,
        in_specs=[pl.BlockSpec((1, Dp, Hp, Wp, tc), lambda i, j: (i, 0, 0, 0, j)),
                  pl.BlockSpec((27, 1, 1, tc), lambda i, j: (0, 0, 0, j))],
        out_specs=pl.BlockSpec((1, D, H, W, tc), lambda i, j: (i, 0, 0, 0, j)),
        compiler_params=_P2,
    )(xp, w27)


@lru_cache(maxsize=None)
def _make_attn_kernel(heads, dh, with_mask):
    inner = heads * dh

    def kernel(qkv_ref, r_ref, *rest):
        if with_mask:
            m_ref, o_ref = rest
            mask = m_ref[...]
        else:
            (o_ref,) = rest
        for hd in range(heads):
            q = qkv_ref[:, :, hd * dh:(hd + 1) * dh].astype(jnp.float32)
            k = qkv_ref[:, :, inner + hd * dh:inner + (hd + 1) * dh].astype(jnp.float32)
            v = qkv_ref[:, :, 2 * inner + hd * dh:2 * inner + (hd + 1) * dh]
            # cosine attention: L2-normalize over the TOKEN axis (dim=-2),
            # exactly as F.normalize(q, dim=-2) in the reference (eps=1e-12).
            q = q * jax.lax.rsqrt(jnp.maximum(jnp.sum(q * q, axis=1, keepdims=True), 1e-24))
            k = k * jax.lax.rsqrt(jnp.maximum(jnp.sum(k * k, axis=1, keepdims=True), 1e-24))
            s = jnp.einsum('tnd,tmd->tnm', q.astype(jnp.bfloat16), k.astype(jnp.bfloat16),
                           preferred_element_type=jnp.float32)
            s = s * r_ref[hd]                        # per-head rescale scalar (SMEM)
            if with_mask:
                s = s + mask
            s = s - jnp.max(s, axis=-1, keepdims=True)
            p = jnp.exp(s)
            p = p / jnp.sum(p, axis=-1, keepdims=True)   # exact softmax
            o = jnp.einsum('tnm,tmd->tnd', p.astype(jnp.bfloat16),
                           v.astype(jnp.bfloat16),
                           preferred_element_type=jnp.float32)
            # store this head's slice directly (no lane-concat of all heads)
            o_ref[:, :, hd * dh:(hd + 1) * dh] = o.astype(o_ref.dtype)
    return kernel


def pallas_cube_attention(qkv, rescale, mask, heads, dim_head):
    """qkv: (Bc, N, 3*inner) fused cube tokens; rescale: (heads,1,1);
    mask: None or (n_B, N, N) shifted-window mask (shared across batch)."""
    Bc, N, c3 = qkv.shape
    inner = heads * dim_head
    assert c3 == 3 * inner
    # vreg-pressure cap: keep the per-head (Tc,N,N) f32 score tensor <= ~128 KiB.
    cap = max(1, (128 * 1024) // (N * N * 4))
    per_cube = N * (3 * inner + inner) * qkv.dtype.itemsize + \
        (N * N * 4 if mask is not None else 0)
    cap = min(cap, max(1, (2 * 1024 * 1024) // per_cube))
    if Bc >= 16:
        cap = min(cap, Bc // 4)                     # >=4 grid steps (v7x megacore)
    elif Bc >= 2:
        cap = min(cap, Bc // 2)
    base = mask.shape[0] if mask is not None else Bc
    Tc = _largest_divisor_leq(base, cap)
    assert Bc % Tc == 0

    in_specs = [pl.BlockSpec((Tc, N, 3 * inner), lambda i: (i, 0, 0)),
                pl.BlockSpec(memory_space=pltpu.MemorySpace.SMEM)]
    args = [qkv, rescale.reshape(-1).astype(jnp.float32)]
    if mask is not None:
        n_rep = base // Tc
        in_specs.append(pl.BlockSpec((Tc, N, N), lambda i: (i % n_rep, 0, 0)))
        args.append(mask)

    return pl.pallas_call(
        _make_attn_kernel(heads, dim_head, mask is not None),
        out_shape=jax.ShapeDtypeStruct((Bc, N, inner), jnp.bfloat16),
        grid=(Bc // Tc,),
        in_specs=in_specs,
        out_specs=pl.BlockSpec((Tc, N, inner), lambda i: (i, 0, 0)),
        compiler_params=_P1,
    )(*args)


# --------------------------------------------------------------------------
# Conv glue (im2col in JAX -> Pallas matmul; weights pre-converted at init)
# --------------------------------------------------------------------------
def conv3d_cl(x, wd, stride, padding, add=None, out_dtype=jnp.bfloat16):
    """x: (B,D,H,W,Cin); wd: dict with 'wm' (K,Cout) bf16, 'k', 'cin', opt 'bias'."""
    B, D, H, W, Cin = x.shape
    kD, kH, kW = wd['k']
    assert Cin == wd['cin']
    sD, sH, sW = stride
    pD, pH, pW = padding
    Do = (D + 2 * pD - kD) // sD + 1
    Ho = (H + 2 * pH - kH) // sH + 1
    Wo = (W + 2 * pW - kW) // sW + 1
    M = B * Do * Ho * Wo
    if (kD, kH, kW) == (1, 1, 1) and stride == (1, 1, 1) and padding == (0, 0, 0):
        A = x.reshape(M, Cin)                       # pure channel mix
    else:
        # TODO(synk): im2col patch tensor still materialized in XLA (bf16).
        xp = jnp.pad(x.astype(jnp.bfloat16),
                     ((0, 0), (pD, pD), (pH, pH), (pW, pW), (0, 0)))
        cols = []
        for kd in range(kD):
            for kh in range(kH):
                for kw_ in range(kW):
                    cols.append(xp[:, kd:kd + sD * (Do - 1) + 1:sD,
                                   kh:kh + sH * (Ho - 1) + 1:sH,
                                   kw_:kw_ + sW * (Wo - 1) + 1:sW, :])
        A = jnp.stack(cols, axis=-2).reshape(M, kD * kH * kW * Cin)
    out = pallas_matmul(A, wd['wm'], bias=wd.get('bias'),
                        adds=(add,) if add is not None else (),
                        out_dtype=out_dtype)
    return out.reshape(B, Do, Ho, Wo, out.shape[-1])


def conv_transpose3d_cl(x, wd, stride, padding, add=None, out_dtype=jnp.bfloat16):
    """ConvTranspose3d as dilation + conv with the pre-flipped weight in wd."""
    B, D, H, W, Cin = x.shape
    kD, kH, kW = wd['k']
    sD, sH, sW = stride
    pD, pH, pW = padding
    Dd, Hd, Wd = (D - 1) * sD + 1, (H - 1) * sH + 1, (W - 1) * sW + 1
    xd = jnp.zeros((B, Dd, Hd, Wd, Cin), x.dtype).at[:, ::sD, ::sH, ::sW, :].set(x)
    return conv3d_cl(xd, wd, (1, 1, 1), (kD - 1 - pD, kH - 1 - pH, kW - 1 - pW),
                     add=add, out_dtype=out_dtype)


# --------------------------------------------------------------------------
# Model pieces
# --------------------------------------------------------------------------
def cube_tokens(x, cube_size):
    """cube_partition (depth block hard-coded to 1 in the reference) + view(-1, cd*ch*cw, C)."""
    b, d, h, w, c = x.shape
    cd, ch, cw = cube_size
    xb = x.reshape(b, d, h // ch, ch, w // cw, cw, c)
    xb = jnp.transpose(xb, (0, 1, 2, 4, 3, 5, 6))
    return xb.reshape(-1, cd * ch * cw, c)


@lru_cache(maxsize=None)
def compute_attn_mask_np(D, H, W, cube_size):
    bd, bh, bw = cube_size
    md, mh, mw = bd // 2, bh // 2, bw // 2
    mask = np.zeros((1, D, H, W, 1), np.float32)
    d_sl = (slice(None, -bd), slice(-bd, -md), slice(-md, None))
    h_sl = (slice(None, -bh), slice(-bh, -mh), slice(-mh, None))
    w_sl = (slice(None, -bw), slice(-bw, -mw), slice(-mw, None))
    cnt = 0
    for ds in d_sl:
        for hs in h_sl:
            for ws in w_sl:
                mask[:, ds, hs, ws, :] = cnt
                cnt += 1
    mb = (mask.reshape(1, D, H // bh, bh, W // bw, bw, 1)
              .transpose(0, 1, 2, 4, 3, 5, 6)
              .reshape(-1, bd * bh * bw))
    diff = mb[:, None, :] - mb[:, :, None]
    return np.where(diff != 0, -100.0, 0.0).astype(np.float32)


def transcube_forward(p, x, cube_size, heads, dim_head, move_block=False, ln=None,
                      extra_add=None):
    b, d, h, w, c = x.shape
    cd, ch, cw = cube_size
    inner = heads * dim_head
    M = b * d * h * w

    # fused (optional PreNorm) QKV projection, done in spatial order (commutes
    # with the cube partition / roll, which are row permutations).
    qkv = pallas_matmul(x.reshape(M, c), p['wqkv'], ln=ln)          # (M, 3*inner) bf16
    qkv = qkv.reshape(b, d, h, w, 3 * inner)
    if move_block:
        # TODO(synk): full-tensor XLA roll; could be folded into the cube gather.
        qkv = jnp.roll(qkv, shift=(-(cd // 2), -(ch // 2), -(cw // 2)), axis=(1, 2, 3))
    qkv_t = cube_tokens(qkv, cube_size)                             # (Bc, N, 3*inner)

    mask = None
    if move_block:
        mask = jnp.asarray(compute_attn_mask_np(d, h, w, tuple(cube_size)))

    o = pallas_cube_attention(qkv_t, p['rescale'], mask, heads, dim_head)  # (Bc, N, inner)

    # NOTE: faithfully mirrors the reference: cube-token order is reinterpreted
    # as spatial order (no inverse cube partition / roll-back before residuals).
    pe_in = qkv_t[..., 2 * inner:].reshape(b, d, h, w, inner)
    pe = pallas_depthwise3(pe_in, p['pe_w1'], gelu=True)
    pe = pallas_depthwise3(pe, p['pe_w2'])

    adds = [pe.reshape(M, c)]
    if extra_add is not None:                       # fused MAB outer residual
        adds.append(extra_add.reshape(M, c))
    out = pallas_matmul(o.reshape(M, inner), p['proj_w'],
                        bias=p['proj_b'], adds=tuple(adds))
    return out.reshape(b, d, h, w, c)


def feedforward_forward(p, x, ln):
    """Returns FeedForward(LayerNorm(x)) + x (GELUs and residual fused into kernels)."""
    b, d, h, w, c = x.shape
    M = b * d * h * w
    y = pallas_matmul(x.reshape(M, c), p['w1'], ln=ln, gelu=True)
    y = y.reshape(b, d, h, w, -1)
    y = pallas_depthwise3(y, p['dw'], gelu=True)
    y = pallas_matmul(y.reshape(M, y.shape[-1]), p['w3'], adds=(x.reshape(M, c),))
    return y.reshape(b, d, h, w, c)


def mab_forward(p, x, cube_size, point_size, heads, dim_head):
    for blk in p['blocks']:
        y = transcube_forward(blk['attn'], x, cube_size, heads, dim_head,
                              move_block=False,
                              ln=(blk['pn_attn']['gamma'], blk['pn_attn']['beta']))
        y = transcube_forward(blk['sc'], y, cube_size, heads, dim_head, move_block=True)
        x = transcube_forward(blk['dp'], y, (point_size, 1, 1), heads, dim_head,
                              move_block=False, extra_add=x)
        x = feedforward_forward(blk['ff'], x,
                                ln=(blk['pn_ff']['gamma'], blk['pn_ff']['beta']))
    return x


def transunet_forward(p, x_cl, emb_dim, stage, num_frm, cube_size=(2, 4, 4)):
    fea = conv3d_cl(x_cl, p['embedding'], (1, 2, 2), (0, 1, 1))
    enc = []
    dim_stage, point_size = emb_dim, num_frm
    for i in range(stage):
        mab_p, down = p['encoder'][i]
        fea = mab_forward(mab_p, fea, cube_size, point_size, dim_stage // emb_dim, emb_dim)
        enc.append(fea)
        fea = conv3d_cl(fea, down, (2, 2, 2), (1, 1, 1))
        dim_stage *= 2
        point_size //= 2
    fea = mab_forward(p['bottleneck'], fea, cube_size, point_size, dim_stage // emb_dim, emb_dim)
    for i in range(stage):
        up, fuse, mab_p = p['decoder'][i]
        fea = conv_transpose3d_cl(fea, up, (2, 2, 2), (0, 0, 0))
        fea = conv3d_cl(jnp.concatenate([fea, enc[stage - 1 - i]], axis=-1),
                        fuse, (1, 1, 1), (0, 0, 0))
        fea = mab_forward(mab_p, fea, cube_size, point_size * 2,
                          (dim_stage // 2) // emb_dim, emb_dim)
        dim_stage //= 2
        point_size *= 2
    b, d, h, w, cin = x_cl.shape
    return conv_transpose3d_cl(fea, p['mapping'], (1, 2, 2), (0, 1, 1),
                               add=x_cl.reshape(b * d * h * w, cin)).reshape(x_cl.shape)


def sep_sts_forward(params, frames, n_feat, num_frm):
    x = jnp.stack(frames, axis=2)                       # (b,c,d,h,w)
    mean_ = jnp.mean(x, axis=(2, 3, 4), keepdims=True)
    x = x - mean_
    b, c, d, h, w = x.shape
    db, hb, wb = 8, 8, 8
    pad_d, pad_h, pad_w = (db - d % db) % db, (hb - h % hb) % hb, (wb - w % wb) % wb
    x = jnp.pad(x, ((0, 0), (0, 0), (pad_d // 2, pad_d // 2),
                    (pad_h // 2, pad_h // 2), (pad_w // 2, pad_w // 2)))
    x_cl = jnp.transpose(x, (0, 2, 3, 4, 1))            # channels-last
    h1 = transunet_forward(params['unet0'], x_cl, n_feat, 2, num_frm)
    h2 = transunet_forward(params['unet1'], h1, n_feat, 2, num_frm)
    y = conv3d_cl(h2 + x_cl, params['conv_out'], (1, 1, 1), (0, 1, 1),
                  out_dtype=jnp.float32)                # (b,1,H,W,3)
    y = jnp.transpose(jnp.squeeze(y, axis=1), (0, 3, 1, 2))             # (b,3,H,W)
    mean_sq = jnp.squeeze(mean_, axis=2)                                # (b,3,1,1)
    return [o + mean_sq for o in jnp.split(y, y.shape[1] // 3, axis=1)]


# --------------------------------------------------------------------------
# Deterministic synthetic parameter initialization (matmul-ready layouts)
# --------------------------------------------------------------------------
class KeyGen:
    def __init__(self, seed=0):
        self.key = jax.random.PRNGKey(seed)

    def __call__(self):
        self.key, sub = jax.random.split(self.key)
        return sub


def _rn(kg, shape, scale):
    return jax.random.normal(kg(), shape, jnp.float32) * scale


def _dw_weight(kg, c):
    w = _rn(kg, (c, 1, 3, 3, 3), 1.0 / math.sqrt(27.0))          # torch (C,1,3,3,3)
    return jnp.transpose(w.reshape(c, 27), (1, 0)).reshape(27, 1, 1, c)


def _conv_param(kg, cout, cin, k, bias=False):
    w = _rn(kg, (cout, cin) + tuple(k), 1.0 / math.sqrt(cin * k[0] * k[1] * k[2]))
    wm = jnp.transpose(w, (2, 3, 4, 1, 0)).reshape(k[0] * k[1] * k[2] * cin, cout)
    p = {'wm': wm.astype(jnp.bfloat16), 'k': tuple(k), 'cin': cin}
    if bias:
        p['bias'] = _rn(kg, (cout,), 1.0 / math.sqrt(cin * k[0] * k[1] * k[2]))
    return p


def _convT_param(kg, cin, cout, k, bias=False):
    w = _rn(kg, (cin, cout) + tuple(k), 1.0 / math.sqrt(cin * k[0] * k[1] * k[2]))
    w_conv = jnp.transpose(jnp.flip(w, axis=(2, 3, 4)), (1, 0, 2, 3, 4))  # (cout,cin,k)
    wm = jnp.transpose(w_conv, (2, 3, 4, 1, 0)).reshape(k[0] * k[1] * k[2] * cin, cout)
    p = {'wm': wm.astype(jnp.bfloat16), 'k': tuple(k), 'cin': cin}
    if bias:
        p['bias'] = _rn(kg, (cout,), 1.0 / math.sqrt(cin * k[0] * k[1] * k[2]))
    return p


def make_transcube(kg, dim, dim_head, heads):
    inner = dim_head * heads
    wq = _rn(kg, (dim, inner), 0.02)
    wk = _rn(kg, (dim, inner), 0.02)
    wv = _rn(kg, (dim, inner), 0.02)
    return {'wqkv': jnp.concatenate([wq, wk, wv], axis=1).astype(jnp.bfloat16),
            'rescale': jnp.ones((heads, 1, 1), jnp.float32),
            'proj_w': _rn(kg, (inner, dim), 0.02).astype(jnp.bfloat16),
            'proj_b': jnp.zeros((dim,), jnp.float32),
            'pe_w1': _dw_weight(kg, dim),
            'pe_w2': _dw_weight(kg, dim)}


def make_ff(kg, dim, mult=4):
    return {'w1': _rn(kg, (dim, dim * mult), 1.0 / math.sqrt(dim)).astype(jnp.bfloat16),
            'dw': _dw_weight(kg, dim * mult),
            'w3': _rn(kg, (dim * mult, dim), 1.0 / math.sqrt(dim * mult)).astype(jnp.bfloat16)}


def make_prenorm(dim):
    return {'gamma': jnp.ones((1, dim), jnp.float32), 'beta': jnp.zeros((1, dim), jnp.float32)}


def make_mab(kg, dim, dim_head, heads, num_blocks):
    blocks = []
    for _ in range(num_blocks):
        blocks.append({'pn_attn': make_prenorm(dim),
                       'attn': make_transcube(kg, dim, dim_head, heads),
                       'sc': make_transcube(kg, dim, dim_head, heads),
                       'dp': make_transcube(kg, dim, dim_head, heads),
                       'pn_ff': make_prenorm(dim),
                       'ff': make_ff(kg, dim)})
    return {'blocks': blocks}


def make_transunet(kg, in_ch, out_ch, emb_dim, stage, num_blocks, num_frm):
    p = {'embedding': _conv_param(kg, emb_dim, in_ch, (1, 4, 4))}
    dim_stage = emb_dim
    enc = []
    for i in range(stage):
        enc.append((make_mab(kg, dim_stage, emb_dim, dim_stage // emb_dim, num_blocks[i]),
                    _conv_param(kg, dim_stage * 2, dim_stage, (4, 4, 4))))
        dim_stage *= 2
    p['encoder'] = enc
    p['bottleneck'] = make_mab(kg, dim_stage, emb_dim, dim_stage // emb_dim, num_blocks[-1])
    dec = []
    for i in range(stage):
        dec.append((_convT_param(kg, dim_stage, dim_stage // 2, (2, 2, 2), bias=True),
                    _conv_param(kg, dim_stage // 2, dim_stage, (1, 1, 1)),
                    make_mab(kg, dim_stage // 2, emb_dim, (dim_stage // 2) // emb_dim,
                             num_blocks[stage - 1 - i])))
        dim_stage //= 2
    p['decoder'] = dec
    p['mapping'] = _convT_param(kg, emb_dim, out_ch, (1, 4, 4), bias=True)
    return p


def make_sep_sts(kg, in_ch=3, out_ch=3, num_frm=8, n_feat=16):
    return {'unet0': make_transunet(kg, in_ch, out_ch, n_feat, 2, [1, 1, 1], num_frm),
            'unet1': make_transunet(kg, in_ch, out_ch, n_feat, 2, [1, 1, 1], num_frm),
            'conv_out': _conv_param(kg, out_ch, out_ch, (8, 3, 3))}


# --------------------------------------------------------------------------
if __name__ == "__main__":
    B, C_IN, H, W = 1, 3, 32, 32
    NUM_FRM = 8
    N_FEAT = 16

    kg = KeyGen(seed=0)
    params = make_sep_sts(kg, in_ch=C_IN, out_ch=3, num_frm=NUM_FRM, n_feat=N_FEAT)

    key = jax.random.PRNGKey(0)
    frame_keys = jax.random.split(key, NUM_FRM)
    frames = [jax.random.normal(frame_keys[i], (B, C_IN, H, W), jnp.float32)
              for i in range(NUM_FRM)]

    outs = sep_sts_forward(params, frames, N_FEAT, NUM_FRM)
    jax.block_until_ready(outs[0])
    assert outs[0].shape == (B, 3, H, W)
    print("KERNEL_OK")
</pallas_src>

<mosaic_0001>
module attributes {stable_mosaic.version = 11 : i64} {
  func.func @kernel(%arg0: i32, %arg1: memref<512x48xbf16, #tpu.memory_space<vmem>>, %arg2: memref<48x16xbf16, #tpu.memory_space<vmem>>, %arg3: memref<512x16xbf16, #tpu.memory_space<vmem>>) attributes {dimension_semantics = [#tpu.dimension_semantics<parallel>], iteration_bounds = array<i64: 4>, scalar_prefetch = 0 : i64, scratch_operands = 0 : i64, tpu.core_type = #tpu.core_type<tc>, window_params = [{transform_indices = @transform_0, window_bounds = array<i64: 512, 48>}, {pipeline_mode = #tpu.pipeline_mode<synchronous>, transform_indices = @transform_1, window_bounds = array<i64: 48, 16>}, {transform_indices = @transform_2, window_bounds = array<i64: 512, 16>}]} {
    %c0 = arith.constant 0 : index
    %c0_0 = arith.constant 0 : index
    %0 = vector.load %arg1[%c0, %c0_0] : memref<512x48xbf16, #tpu.memory_space<vmem>>, vector<512x48xbf16>
    %c0_1 = arith.constant 0 : index
    %c0_2 = arith.constant 0 : index
    %1 = vector.load %arg2[%c0_1, %c0_2] : memref<48x16xbf16, #tpu.memory_space<vmem>>, vector<48x16xbf16>
    %cst = arith.constant dense<0.000000e+00> : vector<512x16xf32>
    %2 = tpu.matmul %0, %1, %cst {dimension_numbers = #tpu.dot_dimension_numbers<[1], [0], [0], [1], [0, 0, 1, 1], [], []>} : vector<512x48xbf16>, vector<48x16xbf16>, vector<512x16xf32> -> vector<512x16xf32>
    %3 = arith.truncf %2 : vector<512x16xf32> to vector<512x16xbf16>
    %c0_3 = arith.constant 0 : index
    %c0_4 = arith.constant 0 : index
    %4 = vector.load %arg3[%c0_3, %c0_4] : memref<512x16xbf16, #tpu.memory_space<vmem>>, vector<512x16xbf16>
    tpu.vector_store %arg3[%c0_3, %c0_4], %3 {strides = array<i32>} : memref<512x16xbf16, #tpu.memory_space<vmem>>, vector<512x16xbf16>,
    return
  }
  func.func @transform_0(%arg0: i32) -> (i32, i32) {
    %c0_i32 = arith.constant 0 : i32
    %c0_i32_0 = arith.constant 0 : i32
    return %arg0, %c0_i32 : i32, i32
  }
  func.func @transform_1(%arg0: i32) -> (i32, i32) {
    %c0_i32 = arith.constant 0 : i32
    %c0_i32_0 = arith.constant 0 : i32
    %c0_i32_1 = arith.constant 0 : i32
    return %c0_i32, %c0_i32_0 : i32, i32
  }
  func.func @transform_2(%arg0: i32) -> (i32, i32) {
    %c0_i32 = arith.constant 0 : i32
    %c0_i32_0 = arith.constant 0 : i32
    return %arg0, %c0_i32 : i32, i32
  }
}

</mosaic_0001>

<llo_original>
// kernel: tpu_custom_call.1
$region0: #{tpu_custom_call.1}
  #allocation0 [shape = 'u32[]', space=smem, size = 0x4, offset = 0x4, fixed_abs, tag = 'smem constant byte address 0x4 - core index']
  #allocation1 [shape = 'u32[144,128]{1,0:T(1,128)}', space=vmem, size = 0x12000, scoped, tag = 'internal scratch']
  %s0 = inlined_call_operand.vmem [shape: bf16[2048,48], index: 0, kind: input, shape index: {}]
  %s1 = inlined_call_operand.vmem [shape: bf16[48,16], index: 1, kind: input, shape index: {}]
  %s2 = inlined_call_operand.vmem [shape: bf16[2048,16], index: 2, kind: output, shape index: {}]
  %s3 = sld [smem:[#allocation0]]
  $region41: #{tpu_custom_call.1} parent=0
    _
  %s5 = ssub.s32 1, %s3
  %s6 = scalar_select 0, %s5, %s3
  loop: start=0, step=1, limit=6
  $region2: #{tpu_custom_call.1} parent=0 // loop_pre_header
    _
  $region3: #{tpu_custom_call.1} parent=0 // loop_header
    %s8 = sphi 0, %s12
    %p9 = scmp.ge.s32.totalorder %s8, 6
    %s18 = sphi 0, %s20
    %s21 = sphi 0, %s18
    %s22 = sphi 0, %s21
    %s38 = sphi 0, %s22
    %s42 = sphi 0, %s42
    %s44 = sphi 0, %s42
    %s45 = sphi 0, %s44
    %s59 = sphi 0, %s45
    %s65 = sphi 0, %s67
    %s68 = sphi 0, %s65
    %s69 = sphi 0, %s68
    %s85 = sphi 0, %s69
  $region4: #{tpu_custom_call.1} parent=0 // loop_header_branch
    %11 = sbr.rel (%p9) target = $region8
  $region5: #{tpu_custom_call.1} parent=0 // loop_body
    %s13 = ssub.s32 %s8, 1
    %s14 = ssub.s32 %s8, 2
    %s15 = sadd.s32 %s8, 1
    %s16 = ssub.s32 %s8, %s15
    %p17 = scmp.eq.s32.totalorder %s16, 0
    %s19 = sadd.s32 %s18, 1
    %s20 = scalar_select %p17, %s18, %s19
    %p23 = pneg %p17
    %p24 = scmp.eq.s32.totalorder %s8, 3
    %p25 = por %p23, %p24
    %p26 = scmp.ne.s32.totalorder %s18, %s21
    %p27 = scmp.eq.s32.totalorder %s8, 0
    %p28 = por %p26, %p27
    %p29 = scmp.ne.s32.totalorder %s18, %s21
    %p30 = scmp.eq.s32.totalorder %s13, 3
    %p31 = por %p29, %p30
    %p32 = scmp.ne.s32.totalorder %s21, %s22
    %p33 = scmp.eq.s32.totalorder %s13, 0
    %p34 = por %p32, %p33
    %p35 = scmp.ne.s32.totalorder %s21, %s22
    %p36 = scmp.eq.s32.totalorder %s14, 3
    %p37 = por %p35, %p36
    %p39 = scmp.ne.s32.totalorder %s22, %s38
    %p40 = scmp.eq.s32.totalorder %s14, 0
    %p41 = por %p39, %p40
    %s43 = sadd.s32 %s42, 1
    %p46 = scmp.eq.s32.totalorder %s8, 3
    %p47 = scmp.ne.s32.totalorder %s42, %s44
    %p48 = scmp.eq.s32.totalorder %s8, 0
    %p49 = por %p47, %p48
    %p50 = scmp.ne.s32.totalorder %s42, %s44
    %p51 = scmp.eq.s32.totalorder %s13, 3
    %p52 = por %p50, %p51
    %p53 = scmp.ne.s32.totalorder %s44, %s45
    %p54 = scmp.eq.s32.totalorder %s13, 0
    %p55 = por %p53, %p54
    %p56 = scmp.ne.s32.totalorder %s44, %s45
    %p57 = scmp.eq.s32.totalorder %s14, 3
    %p58 = por %p56, %p57
    %p60 = scmp.ne.s32.totalorder %s45, %s59
    %p61 = scmp.eq.s32.totalorder %s14, 0
    %p62 = por %p60, %p61
    %s63 = ssub.s32 %s8, %s15
    %p64 = scmp.eq.s32.totalorder %s63, 0
    %s66 = sadd.s32 %s65, 1
    %s67 = scalar_select %p64, %s65, %s66
    %p70 = pneg %p64
    %p71 = scmp.eq.s32.totalorder %s8, 3
    %p72 = por %p70, %p71
    %p73 = scmp.ne.s32.totalorder %s65, %s68
    %p74 = scmp.eq.s32.totalorder %s8, 0
    %p75 = por %p73, %p74
    %p76 = scmp.ne.s32.totalorder %s65, %s68
    %p77 = scmp.eq.s32.totalorder %s13, 3
    %p78 = por %p76, %p77
    %p79 = scmp.ne.s32.totalorder %s68, %s69
    %p80 = scmp.eq.s32.totalorder %s13, 0
    %p81 = por %p79, %p80
    %p82 = scmp.ne.s32.totalorder %s68, %s69
    %p83 = scmp.eq.s32.totalorder %s14, 3
    %p84 = por %p82, %p83
    %p86 = scmp.ne.s32.totalorder %s69, %s85
    %p87 = scmp.eq.s32.totalorder %s14, 0
    %p88 = por %p86, %p87
    %p89 = scmp.le.s32.totalorder 1, %s8
    %p90 = scmp.lt.s32.totalorder %s8, 5
    %p91 = pnand %p89, %p90
    %p92 = pneg %p91
    // Predicated region
    $region9: #{tpu_custom_call.1} parent=5 // pred_check
      _
    $region10: #{tpu_custom_call.1} parent=5 // pred_check_branch
      %94 = sbr.rel (%p91) target = $region12
    $region11: #{tpu_custom_call.1} parent=5 // pred_region
      %s95 = ssub.s32 %s8, 1
      // Predicated region
      $region13: #{tpu_custom_call.1} parent=11 // pred_check
        %p96 = pneg %p55
      $region14: #{tpu_custom_call.1} parent=11 // pred_check_branch
        %98 = sbr.rel (%p96) target = $region16
      $region15: #{tpu_custom_call.1} parent=11 // pred_region
        _
      $region16: #{tpu_custom_call.1} parent=11 // pred_fallthru
        _
    $region12: #{tpu_custom_call.1} parent=5 // pred_fallthru
      _
    %p99 = scmp.lt.s32.totalorder %s8, 4
    // Predicated region
    $region17: #{tpu_custom_call.1} parent=5 // pred_check
      %p100 = pneg %p99
    $region18: #{tpu_custom_call.1} parent=5 // pred_check_branch
      %102 = sbr.rel (%p100) target = $region20
    $region19: #{tpu_custom_call.1} parent=5 // pred_region
      // Predicated region
      $region21: #{tpu_custom_call.1} parent=19 // pred_check
        %p103 = pneg %p28
      $region22: #{tpu_custom_call.1} parent=19 // pred_check_branch
        %105 = sbr.rel (%p103) target = $region24
      $region23: #{tpu_custom_call.1} parent=19 // pred_region
        %s106 = smul.u32 64, %s8
        %p107 = scmp.lt.s32.totalorder %s106, 255
        %s108 = scalar_select %p107, %s106, 255
        %s109 = smul.addr %s108, 4
        %s110 = scalar_lea.vmem %s0, %s109
        %s111 = smul.u32 64, %s8
      $region24: #{tpu_custom_call.1} parent=19 // pred_fallthru
        _
    $region20: #{tpu_custom_call.1} parent=5 // pred_fallthru
      _
    %p112 = scmp.le.s32.totalorder 1, %s8
    %p113 = scmp.lt.s32.totalorder %s8, 5
    %p114 = pnand %p112, %p113
    %p115 = pneg %p114
    // Predicated region
    $region25: #{tpu_custom_call.1} parent=5 // pred_check
      _
    $region26: #{tpu_custom_call.1} parent=5 // pred_check_branch
      %117 = sbr.rel (%p114) target = $region28
    $region27: #{tpu_custom_call.1} parent=5 // pred_region
      %s118 = ssub.s32 %s8, 1
      %s119 = smul.u32 64, %s13
      %p120 = scmp.lt.s32.totalorder %s119, 255
      %s121 = scalar_select %p120, %s119, 255
      %s122 = smul.addr %s121, 4
      %s123 = scalar_lea.vmem %s0, %s122
      %p124 = pneg %p34
      %p125 = pneg %p31
      %p126 = pneg %p55
      %p127 = pneg %p52
      %p128 = pneg %p81
      %p129 = pneg %p78
      %s130 = smul.u32 64, %s13
      %p131 = scmp.lt.s32.totalorder %s130, 255
      %s132 = scalar_select %p131, %s130, 255
      %s133 = smul.addr %s132, 4
      %s134 = scalar_lea.vmem %s2, %s133
      %s135 = smul.u32 64, %s13
      %p136 = scmp.lt.s32.totalorder %s135, 255
      %s137 = scalar_select %p136, %s135, 255
      %s138 = smul.addr %s137, 4
      %s139 = scalar_lea.vmem %s0, %s138
      %s140 = smul.u32 64, %s13
      %s141 = smul.u32 64, %s13
      %p142 = scmp.lt.s32.totalorder %s141, 255
      %s143 = scalar_select %p142, %s141, 255
      %s144 = smul.addr %s143, 4
      %s145 = scalar_lea.vmem %s2, %s144
      %s146 = smul.u32 64, %s13
      %v148 = vld [vmem:[%s139] sm:$0xf]
      %v149 = vld [vmem:[%s139 + $0x4] sm:$0xf]
      %v150 = vld [vmem:[%s139 + $0x8] sm:$0xf]
      %v151 = vld [vmem:[%s139 + $0xc] sm:$0xf]
      %v152 = vld [vmem:[%s139 + $0x10] sm:$0xf]
      %v153 = vld [vmem:[%s139 + $0x14] sm:$0xf]
      %v154 = vld [vmem:[%s139 + $0x18] sm:$0xf]
      %v155 = vld [vmem:[%s139 + $0x1c] sm:$0xf]
      %v156 = vld [vmem:[%s139 + $0x20] sm:$0xf]
      %v157 = vld [vmem:[%s139 + $0x24] sm:$0xf]
      %v158 = vld [vmem:[%s139 + $0x28] sm:$0xf]
      %v159 = vld [vmem:[%s139 + $0x2c] sm:$0xf]
      %v160 = vld [vmem:[%s139 + $0x30] sm:$0xf]
      %v161 = vld [vmem:[%s139 + $0x34] sm:$0xf]
      %v162 = vld [vmem:[%s139 + $0x38] sm:$0xf]
      %v163 = vld [vmem:[%s139 + $0x3c] sm:$0xf]
      %v164 = vld [vmem:[%s139 + $0x40] sm:$0xf]
      %v165 = vld [vmem:[%s139 + $0x44] sm:$0xf]
      %v166 = vld [vmem:[%s139 + $0x48] sm:$0xf]
      %v167 = vld [vmem:[%s139 + $0x4c] sm:$0xf]
      %v168 = vld [vmem:[%s139 + $0x50] sm:$0xf]
      %v169 = vld [vmem:[%s139 + $0x54] sm:$0xf]
      %v170 = vld [vmem:[%s139 + $0x58] sm:$0xf]
      %v171 = vld [vmem:[%s139 + $0x5c] sm:$0xf]
      %v172 = vld [vmem:[%s139 + $0x60] sm:$0xf]
      %v173 = vld [vmem:[%s139 + $0x64] sm:$0xf]
      %v174 = vld [vmem:[%s139 + $0x68] sm:$0xf]
      %v175 = vld [vmem:[%s139 + $0x6c] sm:$0xf]
      %v176 = vld [vmem:[%s139 + $0x70] sm:$0xf]
      %v177 = vld [vmem:[%s139 + $0x74] sm:$0xf]
      %v178 = vld [vmem:[%s139 + $0x78] sm:$0xf]
      %v179 = vld [vmem:[%s139 + $0x7c] sm:$0xf]
      %v180 = vld [vmem:[%s139 + $0x80] sm:$0xf]
      %v181 = vld [vmem:[%s139 + $0x84] sm:$0xf]
      %v182 = vld [vmem:[%s139 + $0x88] sm:$0xf]
      %v183 = vld [vmem:[%s139 + $0x8c] sm:$0xf]
      %v184 = vld [vmem:[%s139 + $0x90] sm:$0xf]
      %v185 = vld [vmem:[%s139 + $0x94] sm:$0xf]
      %v186 = vld [vmem:[%s139 + $0x98] sm:$0xf]
      %v187 = vld [vmem:[%s139 + $0x9c] sm:$0xf]
      %v188 = vld [vmem:[%s139 + $0xa0] sm:$0xf]
      %v189 = vld [vmem:[%s139 + $0xa4] sm:$0xf]
      %v190 = vld [vmem:[%s139 + $0xa8] sm:$0xf]
      %v191 = vld [vmem:[%s139 + $0xac] sm:$0xf]
      %v192 = vld [vmem:[%s139 + $0xb0] sm:$0xf]
      %v193 = vld [vmem:[%s139 + $0xb4] sm:$0xf]
      %v194 = vld [vmem:[%s139 + $0xb8] sm:$0xf]
      %v195 = vld [vmem:[%s139 + $0xbc] sm:$0xf]
      %v196 = vld [vmem:[%s139 + $0xc0] sm:$0xf]
      %v197 = vld [vmem:[%s139 + $0xc4] sm:$0xf]
      %v198 = vld [vmem:[%s139 + $0xc8] sm:$0xf]
      %v199 = vld [vmem:[%s139 + $0xcc] sm:$0xf]
      %v200 = vld [vmem:[%s139 + $0xd0] sm:$0xf]
      %v201 = vld [vmem:[%s139 + $0xd4] sm:$0xf]
      %v202 = vld [vmem:[%s139 + $0xd8] sm:$0xf]
      %v203 = vld [vmem:[%s139 + $0xdc] sm:$0xf]
      %v204 = vld [vmem:[%s139 + $0xe0] sm:$0xf]
      %v205 = vld [vmem:[%s139 + $0xe4] sm:$0xf]
      %v206 = vld [vmem:[%s139 + $0xe8] sm:$0xf]
      %v207 = vld [vmem:[%s139 + $0xec] sm:$0xf]
      %v208 = vld [vmem:[%s139 + $0xf0] sm:$0xf]
      %v209 = vld [vmem:[%s139 + $0xf4] sm:$0xf]
      %v210 = vld [vmem:[%s139 + $0xf8] sm:$0xf]
      %v211 = vld [vmem:[%s139 + $0xfc] sm:$0xf]
      %v212 = vld [vmem:[%s1] sm:$0xf]
      %v213 = vld [vmem:[%s1 + $0x4] sm:$0xf]
      %v214 = vld [vmem:[%s1 + $0x8] sm:$0xf]
      %v215 = vld [vmem:[%s1 + $0xc] sm:$0xf]
      %v216 = vld [vmem:[%s1 + $0x10] sm:$0xf]
      %v217 = vld [vmem:[%s1 + $0x14] sm:$0xf]
      %v282 = vunpack.c.l.b16 %v148
      %v283 = vunpack.c.l.b16 %v149
      %v284 = vunpack.c.l.b16 %v150
      %v285 = vunpack.c.l.b16 %v151
      %v286 = vunpack.c.l.b16 %v152
      %v287 = vunpack.c.l.b16 %v153
      %v288 = vunpack.c.l.b16 %v154
      %v289 = vunpack.c.l.b16 %v155
      %v290 = vunpack.c.l.b16 %v156
      %v291 = vunpack.c.l.b16 %v157
      %v292 = vunpack.c.l.b16 %v158
      %v293 = vunpack.c.l.b16 %v159
      %v294 = vunpack.c.l.b16 %v160
      %v295 = vunpack.c.l.b16 %v161
      %v296 = vunpack.c.l.b16 %v162
      %v297 = vunpack.c.l.b16 %v163
      %v298 = vunpack.c.l.b16 %v164
      %v299 = vunpack.c.l.b16 %v165
      %v300 = vunpack.c.l.b16 %v166
      %v301 = vunpack.c.l.b16 %v167
      %v302 = vunpack.c.l.b16 %v168
      %v303 = vunpack.c.l.b16 %v169
      %v304 = vunpack.c.l.b16 %v170
      %v305 = vunpack.c.l.b16 %v171
      %v306 = vunpack.c.l.b16 %v172
      %v307 = vunpack.c.l.b16 %v173
      %v308 = vunpack.c.l.b16 %v174
      %v309 = vunpack.c.l.b16 %v175
      %v310 = vunpack.c.l.b16 %v176
      %v311 = vunpack.c.l.b16 %v177
      %v312 = vunpack.c.l.b16 %v178
      %v313 = vunpack.c.l.b16 %v179
      %v314 = vunpack.c.l.b16 %v180
      %v315 = vunpack.c.l.b16 %v181
      %v316 = vunpack.c.l.b16 %v182
      %v317 = vunpack.c.l.b16 %v183
      %v318 = vunpack.c.l.b16 %v184
      %v319 = vunpack.c.l.b16 %v185
      %v320 = vunpack.c.l.b16 %v186
      %v321 = vunpack.c.l.b16 %v187
      %v322 = vunpack.c.l.b16 %v188
      %v323 = vunpack.c.l.b16 %v189
      %v324 = vunpack.c.l.b16 %v190
      %v325 = vunpack.c.l.b16 %v191
      %v326 = vunpack.c.l.b16 %v192
      %v327 = vunpack.c.l.b16 %v193
      %v328 = vunpack.c.l.b16 %v194
      %v329 = vunpack.c.l.b16 %v195
      %v330 = vunpack.c.l.b16 %v196
      %v331 = vunpack.c.l.b16 %v197
      %v332 = vunpack.c.l.b16 %v198
      %v333 = vunpack.c.l.b16 %v199
      %v334 = vunpack.c.l.b16 %v200
      %v335 = vunpack.c.l.b16 %v201
      %v336 = vunpack.c.l.b16 %v202
      %v337 = vunpack.c.l.b16 %v203
      %v338 = vunpack.c.l.b16 %v204
      %v339 = vunpack.c.l.b16 %v205
      %v340 = vunpack.c.l.b16 %v206
      %v341 = vunpack.c.l.b16 %v207
      %v342 = vunpack.c.l.b16 %v208
      %v343 = vunpack.c.l.b16 %v209
      %v344 = vunpack.c.l.b16 %v210
      %v345 = vunpack.c.l.b16 %v211
      %v346 = vpack.c.b16 %v283, %v282
      %v347 = vpack.c.b16 %v285, %v284
      %v348 = vpack.c.b16 %v287, %v286
      %v349 = vpack.c.b16 %v289, %v288
      %v350 = vpack.c.b16 %v291, %v290
      %v351 = vpack.c.b16 %v293, %v292
      %v352 = vpack.c.b16 %v295, %v294
      %v353 = vpack.c.b16 %v297, %v296
      %v354 = vpack.c.b16 %v299, %v298
      %v355 = vpack.c.b16 %v301, %v300
      %v356 = vpack.c.b16 %v303, %v302
      %v357 = vpack.c.b16 %v305, %v304
      %v358 = vpack.c.b16 %v307, %v306
      %v359 = vpack.c.b16 %v309, %v308
      %v360 = vpack.c.b16 %v311, %v310
      %v361 = vpack.c.b16 %v313, %v312
      %v362 = vpack.c.b16 %v315, %v314
      %v363 = vpack.c.b16 %v317, %v316
      %v364 = vpack.c.b16 %v319, %v318
      %v365 = vpack.c.b16 %v321, %v320
      %v366 = vpack.c.b16 %v323, %v322
      %v367 = vpack.c.b16 %v325, %v324
      %v368 = vpack.c.b16 %v327, %v326
      %v369 = vpack.c.b16 %v329, %v328
      %v370 = vpack.c.b16 %v331, %v330
      %v371 = vpack.c.b16 %v333, %v332
      %v372 = vpack.c.b16 %v335, %v334
      %v373 = vpack.c.b16 %v337, %v336
      %v374 = vpack.c.b16 %v339, %v338
      %v375 = vpack.c.b16 %v341, %v340
      %v376 = vpack.c.b16 %v343, %v342
      %v377 = vpack.c.b16 %v345, %v344
      %v384 = vunpack.c.l.b16 %v212
      %v385 = vunpack.c.l.b16 %v213
      %v386 = vunpack.c.l.b16 %v214
      %v387 = vunpack.c.l.b16 %v215
      %v388 = vunpack.c.l.b16 %v216
      %v389 = vunpack.c.l.b16 %v217
      %v390 = vpack.c.b16 %v385, %v384
      %v391 = vpack.c.b16 %v387, %v386
      %v392 = vpack.c.b16 %v389, %v388
      %vm396 = vcmask 392192
      %v398 = vsel %vm396, %v346, 0
      %v401 = vsel %vm396, %v347, 0
      %v404 = vsel %vm396, %v348, 0
      %v407 = vsel %vm396, %v349, 0
      %v410 = vsel %vm396, %v350, 0
      %v413 = vsel %vm396, %v351, 0
      %v416 = vsel %vm396, %v352, 0
      %v419 = vsel %vm396, %v353, 0
      %v422 = vsel %vm396, %v354, 0
      %v425 = vsel %vm396, %v355, 0
      %v428 = vsel %vm396, %v356, 0
      %v431 = vsel %vm396, %v357, 0
      %v434 = vsel %vm396, %v358, 0
      %v437 = vsel %vm396, %v359, 0
      %v440 = vsel %vm396, %v360, 0
      %v443 = vsel %vm396, %v361, 0
      %v446 = vsel %vm396, %v362, 0
      %v449 = vsel %vm396, %v363, 0
      %v452 = vsel %vm396, %v364, 0
      %v455 = vsel %vm396, %v365, 0
      %v458 = vsel %vm396, %v366, 0
      %v461 = vsel %vm396, %v367, 0
      %v464 = vsel %vm396, %v368, 0
      %v467 = vsel %vm396, %v369, 0
      %v470 = vsel %vm396, %v370, 0
      %v473 = vsel %vm396, %v371, 0
      %v476 = vsel %vm396, %v372, 0
      %v479 = vsel %vm396, %v373, 0
      %v482 = vsel %vm396, %v374, 0
      %v485 = vsel %vm396, %v375, 0
      %v488 = vsel %vm396, %v376, 0
      %v491 = vsel %vm396, %v377, 0
      %493 = vmatprep.subr.bf16.mxu0 0
      %494 = vmatpush1.bf16.msra.mxu0 %v390
      %495 = vmatprep.subr.bf16.mxu0 0
      %496 = vmatpush1.bf16.msra.mxu0 %v391
      %497 = vmatprep.subr.bf16.mxu0 0
      %498 = vmatpush1.bf16.msra.mxu0 %v392
      %499 = vmatprep.subr.bf16.mxu0 0
      %500 = vmatpush1.bf16.msra.mxu0 0
      %501 = vmatprep.subr.bf16.mxu0 0
      %502 = vmatpush1.bf16.msra.mxu0 0
      %503 = vmatprep.subr.bf16.mxu0 0
      %504 = vmatpush1.bf16.msra.mxu0 0
      %505 = vmatprep.subr.bf16.mxu0 0
      %506 = vmatpush1.bf16.msra.mxu0 0
      %507 = vmatprep.subr.bf16.mxu0 0
      %508 = vmatpush1.bf16.msra.mxu0 0
      %509 = vmatprep.subr.bf16.mxu0 0
      %510 = vmatpush1.bf16.msra.mxu0 0
      %511 = vmatprep.subr.bf16.mxu0 0
      %512 = vmatpush1.bf16.msra.mxu0 0
      %513 = vmatprep.subr.bf16.mxu0 0
      %514 = vmatpush1.bf16.msra.mxu0 0
      %515 = vmatprep.subr.bf16.mxu0 0
      %516 = vmatpush1.bf16.msra.mxu0 0
      %517 = vmatprep.subr.bf16.mxu0 0
      %518 = vmatpush1.bf16.msra.mxu0 0
      %519 = vmatprep.subr.bf16.mxu0 0
      %520 = vmatpush1.bf16.msra.mxu0 0
      %521 = vmatprep.subr.bf16.mxu0 0
      %522 = vmatpush1.bf16.msra.mxu0 0
      %523 = vmatprep.subr.bf16.mxu0 0
      %524 = vmatpush1.bf16.msra.mxu0 0
      %525 = vmatprep.mubr.bf16.mxu0 0
      %526 = vmatmul.mubr.bf16.gmra.mrb[0].mxu0 %v398
      %v527 = vpop.f32.mrb[0].mxu0
      %v528 = vadd.f32 0.0, %v527
      %v529 = vpop.f32.mrb[0].mxu0
      %v530 = vpop.f32.mrb[0].mxu0
      %v531 = vadd.f32 0.0, %v530
      %v532 = vpop.f32.mrb[0].mxu0
      %533 = vmatprep.mubr.bf16.mxu0 0
      %534 = vmatmul.mubr.bf16.gmra.mrb[0].mxu0 %v401
      %v535 = vpop.f32.mrb[0].mxu0
      %v536 = vadd.f32 0.0, %v535
      %v537 = vpop.f32.mrb[0].mxu0
      %v538 = vpop.f32.mrb[0].mxu0
      %v539 = vadd.f32 0.0, %v538
      %v540 = vpop.f32.mrb[0].mxu0
      %541 = vmatprep.mubr.bf16.mxu0 0
      %542 = vmatmul.mubr.bf16.gmra.mrb[0].mxu0 %v404
      %v543 = vpop.f32.mrb[0].mxu0
      %v544 = vadd.f32 0.0, %v543
      %v545 = vpop.f32.mrb[0].mxu0
      %v546 = vpop.f32.mrb[0].mxu0
      %v547 = vadd.f32 0.0, %v546
      %v548 = vpop.f32.mrb[0].mxu0
      %549 = vmatprep.mubr.bf16.mxu0 0
      %550 = vmatmul.mubr.bf16.gmra.mrb[0].mxu0 %v407
      %v551 = vpop.f32.mrb[0].mxu0
      %v552 = vadd.f32 0.0, %v551
      %v553 = vpop.f32.mrb[0].mxu0
      %v554 = vpop.f32.mrb[0].mxu0
      %v555 = vadd.f32 0.0, %v554
      %v556 = vpop.f32.mrb[0].mxu0
      %557 = vmatprep.mubr.bf16.mxu0 0
      %558 = vmatmul.mubr.bf16.gmra.mrb[0].mxu0 %v410
      %v559 = vpop.f32.mrb[0].mxu0
      %v560 = vadd.f32 0.0, %v559
      %v561 = vpop.f32.mrb[0].mxu0
      %v562 = vpop.f32.mrb[0].mxu0
      %v563 = vadd.f32 0.0, %v562
      %v564 = vpop.f32.mrb[0].mxu0
      %565 = vmatprep.mubr.bf16.mxu0 0
      %566 = vmatmul.mubr.bf16.gmra.mrb[0].mxu0 %v413
      %v567 = vpop.f32.mrb[0].mxu0
      %v568 = vadd.f32 0.0, %v567
      %v569 = vpop.f32.mrb[0].mxu0
      %v570 = vpop.f32.mrb[0].mxu0
      %v571 = vadd.f32 0.0, %v570
      %v572 = vpop.f32.mrb[0].mxu0
      %573 = vmatprep.mubr.bf16.mxu0 0
      %574 = vmatmul.mubr.bf16.gmra.mrb[0].mxu0 %v416
      %v575 = vpop.f32.mrb[0].mxu0
      %v576 = vadd.f32 0.0, %v575
      %v577 = vpop.f32.mrb[0].mxu0
      %v578 = vpop.f32.mrb[0].mxu0
      %v579 = vadd.f32 0.0, %v578
      %v580 = vpop.f32.mrb[0].mxu0
      %581 = vmatprep.mubr.bf16.mxu0 0
      %582 = vmatmul.mubr.bf16.gmra.mrb[0].mxu0 %v419
      %v583 = vpop.f32.mrb[0].mxu0
      %v584 = vadd.f32 0.0, %v583
      %v585 = vpop.f32.mrb[0].mxu0
      %v586 = vpop.f32.mrb[0].mxu0
      %v587 = vadd.f32 0.0, %v586
      %v588 = vpop.f32.mrb[0].mxu0
      %589 = vmatprep.mubr.bf16.mxu0 0
      %590 = vmatmul.mubr.bf16.gmra.mrb[0].mxu0 %v422
      %v591 = vpop.f32.mrb[0].mxu0
      %v592 = vadd.f32 0.0, %v591
      %v593 = vpop.f32.mrb[0].mxu0
      %v594 = vpop.f32.mrb[0].mxu0
      %v595 = vadd.f32 0.0, %v594
      %v596 = vpop.f32.mrb[0].mxu0
      %597 = vmatprep.mubr.bf16.mxu0 0
      %598 = vmatmul.mubr.bf16.gmra.mrb[0].mxu0 %v425
      %v599 = vpop.f32.mrb[0].mxu0
      %v600 = vadd.f32 0.0, %v599
      %v601 = vpop.f32.mrb[0].mxu0
      %v602 = vpop.f32.mrb[0].mxu0
      %v603 = vadd.f32 0.0, %v602
      %v604 = vpop.f32.mrb[0].mxu0
      %605 = vmatprep.mubr.bf16.mxu0 0
      %606 = vmatmul.mubr.bf16.gmra.mrb[0].mxu0 %v428
      %v607 = vpop.f32.mrb[0].mxu0
      %v608 = vadd.f32 0.0, %v607
      %v609 = vpop.f32.mrb[0].mxu0
      %v610 = vpop.f32.mrb[0].mxu0
      %v611 = vadd.f32 0.0, %v610
      %v612 = vpop.f32.mrb[0].mxu0
      %613 = vmatprep.mubr.bf16.mxu0 0
      %614 = vmatmul.mubr.bf16.gmra.mrb[0].mxu0 %v431
      %v615 = vpop.f32.mrb[0].mxu0
      %v616 = vadd.f32 0.0, %v615
      %v617 = vpop.f32.mrb[0].mxu0
      %v618 = vpop.f32.mrb[0].mxu0
      %v619 = vadd.f32 0.0, %v618
      %v620 = vpop.f32.mrb[0].mxu0
      %621 = vmatprep.mubr.bf16.mxu0 0
      %622 = vmatmul.mubr.bf16.gmra.mrb[0].mxu0 %v434
      %v623 = vpop.f32.mrb[0].mxu0
      %v624 = vadd.f32 0.0, %v623
      %v625 = vpop.f32.mrb[0].mxu0
      %v626 = vpop.f32.mrb[0].mxu0
      %v627 = vadd.f32 0.0, %v626
      %v628 = vpop.f32.mrb[0].mxu0
      %629 = vmatprep.mubr.bf16.mxu0 0
      %630 = vmatmul.mubr.bf16.gmra.mrb[0].mxu0 %v437
      %v631 = vpop.f32.mrb[0].mxu0
      %v632 = vadd.f32 0.0, %v631
      %v633 = vpop.f32.mrb[0].mxu0
      %v634 = vpop.f32.mrb[0].mxu0
      %v635 = vadd.f32 0.0, %v634
      %v636 = vpop.f32.mrb[0].mxu0
      %637 = vmatprep.mubr.bf16.mxu0 0
      %638 = vmatmul.mubr.bf16.gmra.mrb[0].mxu0 %v440
      %v639 = vpop.f32.mrb[0].mxu0
      %v640 = vadd.f32 0.0, %v639
      %v641 = vpop.f32.mrb[0].mxu0
      %v642 = vpop.f32.mrb[0].mxu0
      %v643 = vadd.f32 0.0, %v642
      %v644 = vpop.f32.mrb[0].mxu0
      %645 = vmatprep.mubr.bf16.mxu0 0
      %646 = vmatmul.mubr.bf16.gmra.mrb[0].mxu0 %v443
      %v647 = vpop.f32.mrb[0].mxu0
      %v648 = vadd.f32 0.0, %v647
      %v649 = vpop.f32.mrb[0].mxu0
      %v650 = vpop.f32.mrb[0].mxu0
      %v651 = vadd.f32 0.0, %v650
      %v652 = vpop.f32.mrb[0].mxu0
      %653 = vmatprep.mubr.bf16.mxu0 0
      %654 = vmatmul.mubr.bf16.gmra.mrb[0].mxu0 %v446
      %v655 = vpop.f32.mrb[0].mxu0
      %v656 = vadd.f32 0.0, %v655
      %v657 = vpop.f32.mrb[0].mxu0
      %v658 = vpop.f32.mrb[0].mxu0
      %v659 = vadd.f32 0.0, %v658
      %v660 = vpop.f32.mrb[0].mxu0
      %661 = vmatprep.mubr.bf16.mxu0 0
      %662 = vmatmul.mubr.bf16.gmra.mrb[0].mxu0 %v449
      %v663 = vpop.f32.mrb[0].mxu0
      %v664 = vadd.f32 0.0, %v663
      %v665 = vpop.f32.mrb[0].mxu0
      %v666 = vpop.f32.mrb[0].mxu0
      %v667 = vadd.f32 0.0, %v666
      %v668 = vpop.f32.mrb[0].mxu0
      %669 = vmatprep.mubr.bf16.mxu0 0
      %670 = vmatmul.mubr.bf16.gmra.mrb[0].mxu0 %v452
      %v671 = vpop.f32.mrb[0].mxu0
      %v672 = vadd.f32 0.0, %v671
      %v673 = vpop.f32.mrb[0].mxu0
      %v674 = vpop.f32.mrb[0].mxu0
      %v675 = vadd.f32 0.0, %v674
      %v676 = vpop.f32.mrb[0].mxu0
      %677 = vmatprep.mubr.bf16.mxu0 0
      %678 = vmatmul.mubr.bf16.gmra.mrb[0].mxu0 %v455
      %v679 = vpop.f32.mrb[0].mxu0
      %v680 = vadd.f32 0.0, %v679
      %v681 = vpop.f32.mrb[0].mxu0
      %v682 = vpop.f32.mrb[0].mxu0
      %v683 = vadd.f32 0.0, %v682
      %v684 = vpop.f32.mrb[0].mxu0
      %685 = vmatprep.mubr.bf16.mxu0 0
      %686 = vmatmul.mubr.bf16.gmra.mrb[0].mxu0 %v458
      %v687 = vpop.f32.mrb[0].mxu0
      %v688 = vadd.f32 0.0, %v687
      %v689 = vpop.f32.mrb[0].mxu0
      %v690 = vpop.f32.mrb[0].mxu0
      %v691 = vadd.f32 0.0, %v690
      %v692 = vpop.f32.mrb[0].mxu0
      %693 = vmatprep.mubr.bf16.mxu0 0
      %694 = vmatmul.mubr.bf16.gmra.mrb[0].mxu0 %v461
      %v695 = vpop.f32.mrb[0].mxu0
      %v696 = vadd.f32 0.0, %v695
      %v697 = vpop.f32.mrb[0].mxu0
      %v698 = vpop.f32.mrb[0].mxu0
      %v699 = vadd.f32 0.0, %v698
      %v700 = vpop.f32.mrb[0].mxu0
      %701 = vmatprep.mubr.bf16.mxu0 0
      %702 = vmatmul.mubr.bf16.gmra.mrb[0].mxu0 %v464
      %v703 = vpop.f32.mrb[0].mxu0
      %v704 = vadd.f32 0.0, %v703
      %v705 = vpop.f32.mrb[0].mxu0
      %v706 = vpop.f32.mrb[0].mxu0
      %v707 = vadd.f32 0.0, %v706
      %v708 = vpop.f32.mrb[0].mxu0
      %709 = vmatprep.mubr.bf16.mxu0 0
      %710 = vmatmul.mubr.bf16.gmra.mrb[0].mxu0 %v467
      %v711 = vpop.f32.mrb[0].mxu0
      %v712 = vadd.f32 0.0, %v711
      %v713 = vpop.f32.mrb[0].mxu0
      %v714 = vpop.f32.mrb[0].mxu0
      %v715 = vadd.f32 0.0, %v714
      %v716 = vpop.f32.mrb[0].mxu0
      %717 = vmatprep.mubr.bf16.mxu0 0
      %718 = vmatmul.mubr.bf16.gmra.mrb[0].mxu0 %v470
      %v719 = vpop.f32.mrb[0].mxu0
      %v720 = vadd.f32 0.0, %v719
      %v721 = vpop.f32.mrb[0].mxu0
      %v722 = vpop.f32.mrb[0].mxu0
      %v723 = vadd.f32 0.0, %v722
      %v724 = vpop.f32.mrb[0].mxu0
      %725 = vmatprep.mubr.bf16.mxu0 0
      %726 = vmatmul.mubr.bf16.gmra.mrb[0].mxu0 %v473
      %v727 = vpop.f32.mrb[0].mxu0
      %v728 = vadd.f32 0.0, %v727
      %v729 = vpop.f32.mrb[0].mxu0
      %v730 = vpop.f32.mrb[0].mxu0
      %v731 = vadd.f32 0.0, %v730
      %v732 = vpop.f32.mrb[0].mxu0
      %733 = vmatprep.mubr.bf16.mxu0 0
      %734 = vmatmul.mubr.bf16.gmra.mrb[0].mxu0 %v476
      %v735 = vpop.f32.mrb[0].mxu0
      %v736 = vadd.f32 0.0, %v735
      %v737 = vpop.f32.mrb[0].mxu0
      %v738 = vpop.f32.mrb[0].mxu0
      %v739 = vadd.f32 0.0, %v738
      %v740 = vpop.f32.mrb[0].mxu0
      %741 = vmatprep.mubr.bf16.mxu0 0
      %742 = vmatmul.mubr.bf16.gmra.mrb[0].mxu0 %v479
      %v743 = vpop.f32.mrb[0].mxu0
      %v744 = vadd.f32 0.0, %v743
      %v745 = vpop.f32.mrb[0].mxu0
      %v746 = vpop.f32.mrb[0].mxu0
      %v747 = vadd.f32 0.0, %v746
      %v748 = vpop.f32.mrb[0].mxu0
      %749 = vmatprep.mubr.bf16.mxu0 0
      %750 = vmatmul.mubr.bf16.gmra.mrb[0].mxu0 %v482
      %v751 = vpop.f32.mrb[0].mxu0
      %v752 = vadd.f32 0.0, %v751
      %v753 = vpop.f32.mrb[0].mxu0
      %v754 = vpop.f32.mrb[0].mxu0
      %v755 = vadd.f32 0.0, %v754
      %v756 = vpop.f32.mrb[0].mxu0
      %757 = vmatprep.mubr.bf16.mxu0 0
      %758 = vmatmul.mubr.bf16.gmra.mrb[0].mxu0 %v485
      %v759 = vpop.f32.mrb[0].mxu0
      %v760 = vadd.f32 0.0, %v759
      %v761 = vpop.f32.mrb[0].mxu0
      %v762 = vpop.f32.mrb[0].mxu0
      %v763 = vadd.f32 0.0, %v762
      %v764 = vpop.f32.mrb[0].mxu0
      %765 = vmatprep.mubr.bf16.mxu0 0
      %766 = vmatmul.mubr.bf16.gmra.mrb[0].mxu0 %v488
      %v767 = vpop.f32.mrb[0].mxu0
      %v768 = vadd.f32 0.0, %v767
      %v769 = vpop.f32.mrb[0].mxu0
      %v770 = vpop.f32.mrb[0].mxu0
      %v771 = vadd.f32 0.0, %v770
      %v772 = vpop.f32.mrb[0].mxu0
      %773 = vmatprep.mubr.bf16.mxu0 0
      %774 = vmatmul.mubr.bf16.gmra.mrb[0].mxu0 %v491
      %v775 = vpop.f32.mrb[0].mxu0
      %v776 = vadd.f32 0.0, %v775
      %v777 = vpop.f32.mrb[0].mxu0
      %v778 = vpop.f32.mrb[0].mxu0
      %v779 = vadd.f32 0.0, %v778
      %v780 = vpop.f32.mrb[0].mxu0
      %781 = vdwg.mxu0
      %v782 = vpack.c.bf16 %v531, %v528
      %v783 = vpack.c.bf16 %v539, %v536
      %v784 = vpack.c.bf16 %v547, %v544
      %v785 = vpack.c.bf16 %v555, %v552
      %v786 = vpack.c.bf16 %v563, %v560
      %v787 = vpack.c.bf16 %v571, %v568
      %v788 = vpack.c.bf16 %v579, %v576
      %v789 = vpack.c.bf16 %v587, %v584
      %v790 = vpack.c.bf16 %v595, %v592
      %v791 = vpack.c.bf16 %v603, %v600
      %v792 = vpack.c.bf16 %v611, %v608
      %v793 = vpack.c.bf16 %v619, %v616
      %v794 = vpack.c.bf16 %v627, %v624
      %v795 = vpack.c.bf16 %v635, %v632
      %v796 = vpack.c.bf16 %v643, %v640
      %v797 = vpack.c.bf16 %v651, %v648
      %v798 = vpack.c.bf16 %v659, %v656
      %v799 = vpack.c.bf16 %v667, %v664
      %v800 = vpack.c.bf16 %v675, %v672
      %v801 = vpack.c.bf16 %v683, %v680
      %v802 = vpack.c.bf16 %v691, %v688
      %v803 = vpack.c.bf16 %v699, %v696
      %v804 = vpack.c.bf16 %v707, %v704
      %v805 = vpack.c.bf16 %v715, %v712
      %v806 = vpack.c.bf16 %v723, %v720
      %v807 = vpack.c.bf16 %v731, %v728
      %v808 = vpack.c.bf16 %v739, %v736
      %v809 = vpack.c.bf16 %v747, %v744
      %v810 = vpack.c.bf16 %v755, %v752
      %v811 = vpack.c.bf16 %v763, %v760
      %v812 = vpack.c.bf16 %v771, %v768
      %v813 = vpack.c.bf16 %v779, %v776
      %v846 = vunpack.c.l.b16 %v782
      %v847 = vunpack.c.h.b16 %v782
      %v848 = vunpack.c.l.b16 %v783
      %v849 = vunpack.c.h.b16 %v783
      %v850 = vunpack.c.l.b16 %v784
      %v851 = vunpack.c.h.b16 %v784
      %v852 = vunpack.c.l.b16 %v785
      %v853 = vunpack.c.h.b16 %v785
      %v854 = vunpack.c.l.b16 %v786
      %v855 = vunpack.c.h.b16 %v786
      %v856 = vunpack.c.l.b16 %v787
      %v857 = vunpack.c.h.b16 %v787
      %v858 = vunpack.c.l.b16 %v788
      %v859 = vunpack.c.h.b16 %v788
      %v860 = vunpack.c.l.b16 %v789
      %v861 = vunpack.c.h.b16 %v789
      %v862 = vunpack.c.l.b16 %v790
      %v863 = vunpack.c.h.b16 %v790
      %v864 = vunpack.c.l.b16 %v791
      %v865 = vunpack.c.h.b16 %v791
      %v866 = vunpack.c.l.b16 %v792
      %v867 = vunpack.c.h.b16 %v792
      %v868 = vunpack.c.l.b16 %v793
      %v869 = vunpack.c.h.b16 %v793
      %v870 = vunpack.c.l.b16 %v794
      %v871 = vunpack.c.h.b16 %v794
      %v872 = vunpack.c.l.b16 %v795
      %v873 = vunpack.c.h.b16 %v795
      %v874 = vunpack.c.l.b16 %v796
      %v875 = vunpack.c.h.b16 %v796
      %v876 = vunpack.c.l.b16 %v797
      %v877 = vunpack.c.h.b16 %v797
      %v878 = vunpack.c.l.b16 %v798
      %v879 = vunpack.c.h.b16 %v798
      %v880 = vunpack.c.l.b16 %v799
      %v881 = vunpack.c.h.b16 %v799
      %v882 = vunpack.c.l.b16 %v800
      %v883 = vunpack.c.h.b16 %v800
      %v884 = vunpack.c.l.b16 %v801
      %v885 = vunpack.c.h.b16 %v801
      %v886 = vunpack.c.l.b16 %v802
      %v887 = vunpack.c.h.b16 %v802
      %v888 = vunpack.c.l.b16 %v803
      %v889 = vunpack.c.h.b16 %v803
      %v890 = vunpack.c.l.b16 %v804
      %v891 = vunpack.c.h.b16 %v804
      %v892 = vunpack.c.l.b16 %v805
      %v893 = vunpack.c.h.b16 %v805
      %v894 = vunpack.c.l.b16 %v806
      %v895 = vunpack.c.h.b16 %v806
      %v896 = vunpack.c.l.b16 %v807
      %v897 = vunpack.c.h.b16 %v807
      %v898 = vunpack.c.l.b16 %v808
      %v899 = vunpack.c.h.b16 %v808
      %v900 = vunpack.c.l.b16 %v809
      %v901 = vunpack.c.h.b16 %v809
      %v902 = vunpack.c.l.b16 %v810
      %v903 = vunpack.c.h.b16 %v810
      %v904 = vunpack.c.l.b16 %v811
      %v905 = vunpack.c.h.b16 %v811
      %v906 = vunpack.c.l.b16 %v812
      %v907 = vunpack.c.h.b16 %v812
      %v908 = vunpack.c.l.b16 %v813
      %v909 = vunpack.c.h.b16 %v813
      %v910 = vpack.c.b16 %v846, %v846
      %v911 = vpack.c.b16 %v847, %v847
      %v912 = vpack.c.b16 %v848, %v848
      %v913 = vpack.c.b16 %v849, %v849
      %v914 = vpack.c.b16 %v850, %v850
      %v915 = vpack.c.b16 %v851, %v851
      %v916 = vpack.c.b16 %v852, %v852
      %v917 = vpack.c.b16 %v853, %v853
      %v918 = vpack.c.b16 %v854, %v854
      %v919 = vpack.c.b16 %v855, %v855
      %v920 = vpack.c.b16 %v856, %v856
      %v921 = vpack.c.b16 %v857, %v857
      %v922 = vpack.c.b16 %v858, %v858
      %v923 = vpack.c.b16 %v859, %v859
      %v924 = vpack.c.b16 %v860, %v860
      %v925 = vpack.c.b16 %v861, %v861
      %v926 = vpack.c.b16 %v862, %v862
      %v927 = vpack.c.b16 %v863, %v863
      %v928 = vpack.c.b16 %v864, %v864
      %v929 = vpack.c.b16 %v865, %v865
      %v930 = vpack.c.b16 %v866, %v866
      %v931 = vpack.c.b16 %v867, %v867
      %v932 = vpack.c.b16 %v868, %v868
      %v933 = vpack.c.b16 %v869, %v869
      %v934 = vpack.c.b16 %v870, %v870
      %v935 = vpack.c.b16 %v871, %v871
      %v936 = vpack.c.b16 %v872, %v872
      %v937 = vpack.c.b16 %v873, %v873
      %v938 = vpack.c.b16 %v874, %v874
      %v939 = vpack.c.b16 %v875, %v875
      %v940 = vpack.c.b16 %v876, %v876
      %v941 = vpack.c.b16 %v877, %v877
      %v942 = vpack.c.b16 %v878, %v878
      %v943 = vpack.c.b16 %v879, %v879
      %v944 = vpack.c.b16 %v880, %v880
      %v945 = vpack.c.b16 %v881, %v881
      %v946 = vpack.c.b16 %v882, %v882
      %v947 = vpack.c.b16 %v883, %v883
      %v948 = vpack.c.b16 %v884, %v884
      %v949 = vpack.c.b16 %v885, %v885
      %v950 = vpack.c.b16 %v886, %v886
      %v951 = vpack.c.b16 %v887, %v887
      %v952 = vpack.c.b16 %v888, %v888
      %v953 = vpack.c.b16 %v889, %v889
      %v954 = vpack.c.b16 %v890, %v890
      %v955 = vpack.c.b16 %v891, %v891
      %v956 = vpack.c.b16 %v892, %v892
      %v957 = vpack.c.b16 %v893, %v893
      %v958 = vpack.c.b16 %v894, %v894
      %v959 = vpack.c.b16 %v895, %v895
      %v960 = vpack.c.b16 %v896, %v896
      %v961 = vpack.c.b16 %v897, %v897
      %v962 = vpack.c.b16 %v898, %v898
      %v963 = vpack.c.b16 %v899, %v899
      %v964 = vpack.c.b16 %v900, %v900
      %v965 = vpack.c.b16 %v901, %v901
      %v966 = vpack.c.b16 %v902, %v902
      %v967 = vpack.c.b16 %v903, %v903
      %v968 = vpack.c.b16 %v904, %v904
      %v969 = vpack.c.b16 %v905, %v905
      %v970 = vpack.c.b16 %v906, %v906
      %v971 = vpack.c.b16 %v907, %v907
      %v972 = vpack.c.b16 %v908, %v908
      %v973 = vpack.c.b16 %v909, %v909
      %vm1038 = vcmask 125952
      %1039 = vst.msk [vmem:[%s145] sm:$0xf] %vm1038, %v910
      %1040 = vst.msk [vmem:[%s145 + $0x4] sm:$0xf] %vm1038, %v911
      %1041 = vst.msk [vmem:[%s145 + $0x8] sm:$0xf] %vm1038, %v912
      %1042 = vst.msk [vmem:[%s145 + $0xc] sm:$0xf] %vm1038, %v913
      %1043 = vst.msk [vmem:[%s145 + $0x10] sm:$0xf] %vm1038, %v914
      %1044 = vst.msk [vmem:[%s145 + $0x14] sm:$0xf] %vm1038, %v915
      %1045 = vst.msk [vmem:[%s145 + $0x18] sm:$0xf] %vm1038, %v916
      %1046 = vst.msk [vmem:[%s145 + $0x1c] sm:$0xf] %vm1038, %v917
      %1047 = vst.msk [vmem:[%s145 + $0x20] sm:$0xf] %vm1038, %v918
      %1048 = vst.msk [vmem:[%s145 + $0x24] sm:$0xf] %vm1038, %v919
      %1049 = vst.msk [vmem:[%s145 + $0x28] sm:$0xf] %vm1038, %v920
      %1050 = vst.msk [vmem:[%s145 + $0x2c] sm:$0xf] %vm1038, %v921
      %1051 = vst.msk [vmem:[%s145 + $0x30] sm:$0xf] %vm1038, %v922
      %1052 = vst.msk [vmem:[%s145 + $0x34] sm:$0xf] %vm1038, %v923
      %1053 = vst.msk [vmem:[%s145 + $0x38] sm:$0xf] %vm1038, %v924
      %1054 = vst.msk [vmem:[%s145 + $0x3c] sm:$0xf] %vm1038, %v925
      %1055 = vst.msk [vmem:[%s145 + $0x40] sm:$0xf] %vm1038, %v926
      %1056 = vst.msk [vmem:[%s145 + $0x44] sm:$0xf] %vm1038, %v927
      %1057 = vst.msk [vmem:[%s145 + $0x48] sm:$0xf] %vm1038, %v928
      %1058 = vst.msk [vmem:[%s145 + $0x4c] sm:$0xf] %vm1038, %v929
      %1059 = vst.msk [vmem:[%s145 + $0x50] sm:$0xf] %vm1038, %v930
      %1060 = vst.msk [vmem:[%s145 + $0x54] sm:$0xf] %vm1038, %v931
      %1061 = vst.msk [vmem:[%s145 + $0x58] sm:$0xf] %vm1038, %v932
      %1062 = vst.msk [vmem:[%s145 + $0x5c] sm:$0xf] %vm1038, %v933
      %1063 = vst.msk [vmem:[%s145 + $0x60] sm:$0xf] %vm1038, %v934
      %1064 = vst.msk [vmem:[%s145 + $0x64] sm:$0xf] %vm1038, %v935
      %1065 = vst.msk [vmem:[%s145 + $0x68] sm:$0xf] %vm1038, %v936
      %1066 = vst.msk [vmem:[%s145 + $0x6c] sm:$0xf] %vm1038, %v937
      %1067 = vst.msk [vmem:[%s145 + $0x70] sm:$0xf] %vm1038, %v938
      %1068 = vst.msk [vmem:[%s145 + $0x74] sm:$0xf] %vm1038, %v939
      %1069 = vst.msk [vmem:[%s145 + $0x78] sm:$0xf] %vm1038, %v940
      %1070 = vst.msk [vmem:[%s145 + $0x7c] sm:$0xf] %vm1038, %v941
      %1071 = vst.msk [vmem:[%s145 + $0x80] sm:$0xf] %vm1038, %v942
      %1072 = vst.msk [vmem:[%s145 + $0x84] sm:$0xf] %vm1038, %v943
      %1073 = vst.msk [vmem:[%s145 + $0x88] sm:$0xf] %vm1038, %v944
      %1074 = vst.msk [vmem:[%s145 + $0x8c] sm:$0xf] %vm1038, %v945
      %1075 = vst.msk [vmem:[%s145 + $0x90] sm:$0xf] %vm1038, %v946
      %1076 = vst.msk [vmem:[%s145 + $0x94] sm:$0xf] %vm1038, %v947
      %1077 = vst.msk [vmem:[%s145 + $0x98] sm:$0xf] %vm1038, %v948
      %1078 = vst.msk [vmem:[%s145 + $0x9c] sm:$0xf] %vm1038, %v949
      %1079 = vst.msk [vmem:[%s145 + $0xa0] sm:$0xf] %vm1038, %v950
      %1080 = vst.msk [vmem:[%s145 + $0xa4] sm:$0xf] %vm1038, %v951
      %1081 = vst.msk [vmem:[%s145 + $0xa8] sm:$0xf] %vm1038, %v952
      %1082 = vst.msk [vmem:[%s145 + $0xac] sm:$0xf] %vm1038, %v953
      %1083 = vst.msk [vmem:[%s145 + $0xb0] sm:$0xf] %vm1038, %v954
      %1084 = vst.msk [vmem:[%s145 + $0xb4] sm:$0xf] %vm1038, %v955
      %1085 = vst.msk [vmem:[%s145 + $0xb8] sm:$0xf] %vm1038, %v956
      %1086 = vst.msk [vmem:[%s145 + $0xbc] sm:$0xf] %vm1038, %v957
      %1087 = vst.msk [vmem:[%s145 + $0xc0] sm:$0xf] %vm1038, %v958
      %1088 = vst.msk [vmem:[%s145 + $0xc4] sm:$0xf] %vm1038, %v959
      %1089 = vst.msk [vmem:[%s145 + $0xc8] sm:$0xf] %vm1038, %v960
      %1090 = vst.msk [vmem:[%s145 + $0xcc] sm:$0xf] %vm1038, %v961
      %1091 = vst.msk [vmem:[%s145 + $0xd0] sm:$0xf] %vm1038, %v962
      %1092 = vst.msk [vmem:[%s145 + $0xd4] sm:$0xf] %vm1038, %v963
      %1093 = vst.msk [vmem:[%s145 + $0xd8] sm:$0xf] %vm1038, %v964
      %1094 = vst.msk [vmem:[%s145 + $0xdc] sm:$0xf] %vm1038, %v965
      %1095 = vst.msk [vmem:[%s145 + $0xe0] sm:$0xf] %vm1038, %v966
      %1096 = vst.msk [vmem:[%s145 + $0xe4] sm:$0xf] %vm1038, %v967
      %1097 = vst.msk [vmem:[%s145 + $0xe8] sm:$0xf] %vm1038, %v968
      %1098 = vst.msk [vmem:[%s145 + $0xec] sm:$0xf] %vm1038, %v969
      %1099 = vst.msk [vmem:[%s145 + $0xf0] sm:$0xf] %vm1038, %v970
      %1100 = vst.msk [vmem:[%s145 + $0xf4] sm:$0xf] %vm1038, %v971
      %1101 = vst.msk [vmem:[%s145 + $0xf8] sm:$0xf] %vm1038, %v972
      %1102 = vst.msk [vmem:[%s145 + $0xfc] sm:$0xf] %vm1038, %v973
      %s1103 = smul.u32 64, %s13
      %p1104 = scmp.lt.s32.totalorder %s1103, 255
      %s1105 = scalar_select %p1104, %s1103, 255
      %s1106 = smul.addr %s1105, 4
      %s1107 = scalar_lea.vmem %s2, %s1106
      // Predicated region
      $region29: #{tpu_custom_call.1} parent=27 // pred_check
        %p1108 = pneg %p78
      $region30: #{tpu_custom_call.1} parent=27 // pred_check_branch
        %1110 = sbr.rel (%p1108) target = $region32
      $region31: #{tpu_custom_call.1} parent=27 // pred_region
        %s1111 = smul.u32 64, %s13
      $region32: #{tpu_custom_call.1} parent=27 // pred_fallthru
        _
    $region28: #{tpu_custom_call.1} parent=5 // pred_fallthru
      _
    %p1112 = scmp.le.s32.totalorder 2, %s8
    // Predicated region
    $region33: #{tpu_custom_call.1} parent=5 // pred_check
      %p1113 = pneg %p1112
    $region34: #{tpu_custom_call.1} parent=5 // pred_check_branch
      %1115 = sbr.rel (%p1113) target = $region36
    $region35: #{tpu_custom_call.1} parent=5 // pred_region
      %s1116 = ssub.s32 %s8, 2
      // Predicated region
      $region37: #{tpu_custom_call.1} parent=35 // pred_check
        %p1117 = pneg %p84
      $region38: #{tpu_custom_call.1} parent=35 // pred_check_branch
        %1119 = sbr.rel (%p1117) target = $region40
      $region39: #{tpu_custom_call.1} parent=35 // pred_region
        %s1120 = smul.u32 64, %s14
        %p1121 = scmp.lt.s32.totalorder %s1120, 255
        %s1122 = scalar_select %p1121, %s1120, 255
        %s1123 = smul.addr %s1122, 4
        %s1124 = scalar_lea.vmem %s2, %s1123
      $region40: #{tpu_custom_call.1} parent=35 // pred_fallthru
        _
    $region36: #{tpu_custom_call.1} parent=5 // pred_fallthru
      _
  $region6: #{tpu_custom_call.1} parent=0 // loop_footer
    %s12 = sadd.s32 1, %s8
  $region7: #{tpu_custom_call.1} parent=0 // loop_footer_branch
    %7 = sbr.rel target = $region3
  $region8: #{tpu_custom_call.1} parent=0 // loop_exit
    _

</llo_original>
